<compile_context>
chip_gen: v7x
topology: tpu7x:2x2x1
jax: 0.10.0
libtpu: 0.0.40
codegen_flags: <defaults>
</compile_context>

<pallas_src>
import functools

import jax
import jax.numpy as jnp
from jax.experimental import pallas as pl
from jax.experimental.pallas import tpu as pltpu

_MIB = 1 << 20


def _closs_kernel_cols(ft_ref, out_ref, *, num_stocks: int):
    """Batch-on-lanes layout (num_stocks < 128): ft block (N, TB), out block (1, TB)."""
    n = num_stocks
    half = n // 2
    ft = ft_ref[...].astype(jnp.float32)                       # (N, TB)

    # Linear term: sum(f[half:]) - sum(f[:half]) == sum(sgn * f). (N,1) iota only.
    row = jax.lax.broadcasted_iota(jnp.int32, (n, 1), 0)
    sgn = jnp.where(row >= half, jnp.float32(1.0), jnp.float32(-1.0))
    linear = jnp.sum(ft * sgn, axis=0, keepdims=True)          # (1, TB)

    # Center each sample at the midpoint of its range; the +-c terms cancel
    # exactly between the +f and -f logsumexp of the same window.
    c = 0.5 * (jnp.max(ft, axis=0, keepdims=True)
               + jnp.min(ft, axis=0, keepdims=True))           # (1, TB)
    e = jnp.exp(ft - c)                                        # single EUP exp pass
    r = pl.reciprocal(e, approx=True)                          # EUP slot
    r = r * (2.0 - e * r)                                      # 1 Newton step -> ~1 ulp

    # Window indicator W^T[i, j] = 1 iff i <= j < N - i, generated in-kernel.
    ii = jax.lax.broadcasted_iota(jnp.int32, (half, n), 0)
    jj = jax.lax.broadcasted_iota(jnp.int32, (half, n), 1)
    wt = ((jj >= ii) & (jj < (n - ii))).astype(jnp.float32)    # (half, N)

    # All N/2 window sums at once on the MXU; lane dim = TB (lane-dense).
    sp = jnp.dot(wt, e, preferred_element_type=jnp.float32)    # (half, TB)
    sn = jnp.dot(wt, r, preferred_element_type=jnp.float32)    # (half, TB)

    # TODO(synk): if an inner window sits >~87 below the sample midpoint its
    # exp-sum can underflow to 0 (log -> -inf) while a per-window-max reference
    # stays finite; add a per-window correction if inputs are not range-bounded.
    windowed = (jnp.sum(jnp.log(sp), axis=0, keepdims=True)
                + jnp.sum(jnp.log(sn), axis=0, keepdims=True)) # (1, TB)

    out_ref[...] = (linear + windowed).astype(out_ref.dtype)


def _closs_kernel_rows(f_ref, out_ref, *, num_stocks: int):
    """Row-major layout (num_stocks >= 128): f block (TB, N), out block (TB, 1)."""
    n = num_stocks
    half = n // 2
    f = f_ref[...].astype(jnp.float32)                         # (TB, N)

    col = jax.lax.broadcasted_iota(jnp.int32, (1, n), 1)
    sgn = jnp.where(col >= half, jnp.float32(1.0), jnp.float32(-1.0))
    linear = jnp.sum(f * sgn, axis=1, keepdims=True)           # (TB, 1)

    c = 0.5 * (jnp.max(f, axis=1, keepdims=True)
               + jnp.min(f, axis=1, keepdims=True))            # (TB, 1)
    e = jnp.exp(f - c)
    r = pl.reciprocal(e, approx=True)
    r = r * (2.0 - e * r)

    # W[j, i] = 1 iff i <= j < N - i, generated in-kernel.
    jj = jax.lax.broadcasted_iota(jnp.int32, (n, half), 0)
    ii = jax.lax.broadcasted_iota(jnp.int32, (n, half), 1)
    w = ((jj >= ii) & (jj < (n - ii))).astype(jnp.float32)     # (N, half)

    sp = jnp.dot(e, w, preferred_element_type=jnp.float32)     # (TB, half)
    sn = jnp.dot(r, w, preferred_element_type=jnp.float32)     # (TB, half)

    windowed = (jnp.sum(jnp.log(sp), axis=1, keepdims=True)
                + jnp.sum(jnp.log(sn), axis=1, keepdims=True)) # (TB, 1)

    out_ref[...] = (linear + windowed).astype(out_ref.dtype)


def _tile_and_vmem(batch: int, n: int, lanes_are_batch: bool, max_tile):
    """Pick the batch-tile size against an explicit VMEM budget.

    Per-step f32 bytes:
      f tile (double-buffered)            2 * n * tb * 4
      e, r and ~2 elementwise temporaries 4 * n * tb * 4
      in-kernel window matrix (+ slack)   2 * n * (n//2) * 4
      sp / sn matmul outputs              2 * (n//2) * tb * 4
    """
    half = max(1, n // 2)
    align = 128 if lanes_are_batch else 8          # lane dim must be 128-aligned when tiled
    cap = max_tile if max_tile is not None else (1024 if lanes_are_batch else 512)
    budget = 12 * _MIB                              # safe under v5e's 16 MiB scoped default
    fixed = 2 * n * half * 4
    per = 6 * n * 4 + 2 * half * 4 + 16
    fit = max(align, (budget - fixed) // per)
    tb = int(min(fit, cap, batch))
    if tb < batch:                                  # tiled: alignment constraint applies
        tb = max(align, (tb // align) * align)
        tb = min(tb, batch)
    est = fixed + per * tb + 2 * _MIB               # + Mosaic internal slack
    vmem_limit = int(min(48 * _MIB, max(24 * _MIB, 2 * est)))
    return tb, vmem_limit


def closs(f: jax.Array, num_stocks: int, *, max_tile=None) -> jax.Array:
    """Pallas implementation of Closs.forward(f, num_stocks). Returns a scalar."""
    assert f.ndim == 2 and f.shape[1] == num_stocks, "expects f of shape [B, num_stocks]"
    assert num_stocks >= 2
    b, n = f.shape
    lanes_are_batch = n < 128
    tb, vmem_limit = _tile_and_vmem(b, n, lanes_are_batch, max_tile)
    grid = (pl.cdiv(b, tb),)
    params = pltpu.CompilerParams(
        dimension_semantics=("parallel",),          # disjoint output blocks -> megacore OK
        vmem_limit_bytes=vmem_limit)

    if lanes_are_batch:
        # Batch on lanes: transpose in the wrapper (layout plumbing only).
        per_sample = pl.pallas_call(
            functools.partial(_closs_kernel_cols, num_stocks=n),
            out_shape=jax.ShapeDtypeStruct((1, b), jnp.float32),
            grid=grid,
            in_specs=[pl.BlockSpec((n, tb), lambda i: (0, i))],
            out_specs=pl.BlockSpec((1, tb), lambda i: (0, i)),
            compiler_params=params,
        )(f.T)[0]
    else:
        per_sample = pl.pallas_call(
            functools.partial(_closs_kernel_rows, num_stocks=n),
            out_shape=jax.ShapeDtypeStruct((b, 1), jnp.float32),
            grid=grid,
            in_specs=[pl.BlockSpec((tb, n), lambda i: (i, 0))],
            out_specs=pl.BlockSpec((tb, 1), lambda i: (i, 0)),
            compiler_params=params,
        )(f)[:, 0]

    # Final mean over exactly B per-sample losses (out-of-bounds tile columns /
    # rows are clipped by Pallas on writeback, so no masking is needed here).
    return jnp.mean(per_sample)


def _closs_ref(f: jax.Array, num_stocks: int) -> jax.Array:
    """Pure-JAX reference mirroring the PyTorch code exactly."""
    f = f.astype(jnp.float32)
    half = num_stocks // 2
    l = jnp.sum(f[:, half:], axis=1) - jnp.sum(f[:, :half], axis=1)
    for i in range(half):
        l = l + jax.nn.logsumexp(f[:, i:num_stocks - i], axis=1)
        l = l + jax.nn.logsumexp(-f[:, i:num_stocks - i], axis=1)
    return jnp.mean(l)


if __name__ == "__main__":
    key = jax.random.PRNGKey(0)
    k1, k2, k3 = jax.random.split(key, 3)
    ref_fn = jax.jit(_closs_ref, static_argnums=1)

    # 1) Small N (< 128) -> batch-on-lanes path, single tile.
    f1 = jax.random.normal(k1, (8, 16), dtype=jnp.float32)
    o1 = closs(f1, 16)
    jax.block_until_ready(o1)
    r1 = ref_fn(f1, 16)
    assert jnp.allclose(o1, r1, rtol=1e-4, atol=1e-3), (o1, r1)

    # 2) Small odd N, batch tiled along the lane axis: 3 parallel grid steps,
    #    last one partially out-of-bounds (exercises edge-block clipping).
    f2 = jax.random.normal(k2, (300, 11), dtype=jnp.float32)
    o2 = closs(f2, 11, max_tile=128)
    jax.block_until_ready(o2)
    r2 = ref_fn(f2, 11)
    assert jnp.allclose(o2, r2, rtol=1e-4, atol=1e-3), (o2, r2)

    # 3) N >= 128 -> row-major path, batch tiled on sublanes with a ragged tail.
    f3 = jax.random.normal(k3, (40, 128), dtype=jnp.float32)
    o3 = closs(f3, 128, max_tile=16)
    jax.block_until_ready(o3)
    r3 = ref_fn(f3, 128)
    assert jnp.allclose(o3, r3, rtol=1e-4, atol=1e-3), (o3, r3)

    print("KERNEL_OK")
</pallas_src>

<mosaic_0001>
module attributes {stable_mosaic.version = 11 : i64} {
  func.func @_closs_kernel_cols(%arg0: i32, %arg1: memref<16x8xf32, #tpu.memory_space<vmem>>, %arg2: memref<1x8xf32, #tpu.memory_space<vmem>>) attributes {dimension_semantics = [#tpu.dimension_semantics<parallel>], iteration_bounds = array<i64: 1>, scalar_prefetch = 0 : i64, scratch_operands = 0 : i64, tpu.core_type = #tpu.core_type<tc>, window_params = [{transform_indices = @transform_0, window_bounds = array<i64: 16, 8>}, {transform_indices = @transform_1, window_bounds = array<i64: 1, 8>}]} {
    %c0 = arith.constant 0 : index
    %c0_0 = arith.constant 0 : index
    %0 = vector.load %arg1[%c0, %c0_0] : memref<16x8xf32, #tpu.memory_space<vmem>>, vector<16x8xf32>
    %1 = tpu.iota {dimensions = array<i32: 0>} : vector<16x1xi32>
    %c8_i32 = arith.constant 8 : i32
    %2 = vector.broadcast %c8_i32 : i32 to vector<16x1xi32>
    %3 = arith.cmpi sge, %1, %2 : vector<16x1xi32>
    %cst = arith.constant 1.000000e+00 : f32
    %cst_1 = arith.constant -1.000000e+00 : f32
    %4 = vector.broadcast %cst : f32 to vector<16x1xf32>
    %5 = vector.broadcast %cst_1 : f32 to vector<16x1xf32>
    %6 = arith.select %3, %4, %5 : vector<16x1xi1>, vector<16x1xf32>
    %7 = vector.broadcast %6 : vector<16x1xf32> to vector<16x8xf32>
    %8 = arith.mulf %0, %7 : vector<16x8xf32>
    %cst_2 = arith.constant dense<0.000000e+00> : vector<8xf32>
    %9 = vector.multi_reduction <add>, %8, %cst_2 [0] : vector<16x8xf32> to vector<8xf32>
    %10 = vector.shape_cast %9 : vector<8xf32> to vector<1x8xf32>
    %cst_3 = arith.constant dense<0xFF800000> : vector<8xf32>
    %11 = vector.multi_reduction <maximumf>, %0, %cst_3 [0] : vector<16x8xf32> to vector<8xf32>
    %12 = vector.shape_cast %11 : vector<8xf32> to vector<1x8xf32>
    %cst_4 = arith.constant dense<0x7F800000> : vector<8xf32>
    %13 = vector.multi_reduction <minimumf>, %0, %cst_4 [0] : vector<16x8xf32> to vector<8xf32>
    %14 = vector.shape_cast %13 : vector<8xf32> to vector<1x8xf32>
    %15 = arith.addf %12, %14 : vector<1x8xf32>
    %cst_5 = arith.constant 5.000000e-01 : f32
    %16 = vector.broadcast %cst_5 : f32 to vector<1x8xf32>
    %17 = arith.mulf %16, %15 : vector<1x8xf32>
    %18 = vector.broadcast %17 : vector<1x8xf32> to vector<16x8xf32>
    %19 = arith.subf %0, %18 : vector<16x8xf32>
    %20 = math.exp %19 : vector<16x8xf32>
    %21 = tpu.reciprocal %20 {approx = true} : vector<16x8xf32> -> vector<16x8xf32>
    %22 = arith.mulf %20, %21 : vector<16x8xf32>
    %cst_6 = arith.constant 2.000000e+00 : f32
    %23 = vector.broadcast %cst_6 : f32 to vector<16x8xf32>
    %24 = arith.subf %23, %22 : vector<16x8xf32>
    %25 = arith.mulf %21, %24 : vector<16x8xf32>
    %26 = tpu.iota {dimensions = array<i32: 0>} : vector<8x16xi32>
    %27 = tpu.iota {dimensions = array<i32: 1>} : vector<8x16xi32>
    %28 = arith.cmpi sge, %27, %26 : vector<8x16xi32>
    %c16_i32 = arith.constant 16 : i32
    %29 = vector.broadcast %c16_i32 : i32 to vector<8x16xi32>
    %30 = arith.subi %29, %26 : vector<8x16xi32>
    %31 = arith.cmpi slt, %27, %30 : vector<8x16xi32>
    %32 = arith.andi %28, %31 : vector<8x16xi1>
    %33 = arith.extui %32 : vector<8x16xi1> to vector<8x16xi32>
    %34 = arith.sitofp %33 : vector<8x16xi32> to vector<8x16xf32>
    %cst_7 = arith.constant dense<0.000000e+00> : vector<8x8xf32>
    %35 = tpu.matmul %34, %20, %cst_7 {dimension_numbers = #tpu.dot_dimension_numbers<[1], [0], [0], [1], [0, 0, 1, 1], [], []>} : vector<8x16xf32>, vector<16x8xf32>, vector<8x8xf32> -> vector<8x8xf32>
    %cst_8 = arith.constant dense<0.000000e+00> : vector<8x8xf32>
    %36 = tpu.matmul %34, %25, %cst_8 {dimension_numbers = #tpu.dot_dimension_numbers<[1], [0], [0], [1], [0, 0, 1, 1], [], []>} : vector<8x16xf32>, vector<16x8xf32>, vector<8x8xf32> -> vector<8x8xf32>
    %37 = math.log %35 : vector<8x8xf32>
    %cst_9 = arith.constant dense<0.000000e+00> : vector<8xf32>
    %38 = vector.multi_reduction <add>, %37, %cst_9 [0] : vector<8x8xf32> to vector<8xf32>
    %39 = vector.shape_cast %38 : vector<8xf32> to vector<1x8xf32>
    %40 = math.log %36 : vector<8x8xf32>
    %cst_10 = arith.constant dense<0.000000e+00> : vector<8xf32>
    %41 = vector.multi_reduction <add>, %40, %cst_10 [0] : vector<8x8xf32> to vector<8xf32>
    %42 = vector.shape_cast %41 : vector<8xf32> to vector<1x8xf32>
    %43 = arith.addf %39, %42 : vector<1x8xf32>
    %44 = arith.addf %10, %43 : vector<1x8xf32>
    %c0_11 = arith.constant 0 : index
    %c0_12 = arith.constant 0 : index
    %45 = vector.load %arg2[%c0_11, %c0_12] : memref<1x8xf32, #tpu.memory_space<vmem>>, vector<1x8xf32>
    tpu.vector_store %arg2[%c0_11, %c0_12], %44 {strides = array<i32>} : memref<1x8xf32, #tpu.memory_space<vmem>>, vector<1x8xf32>,
    return
  }
  func.func @transform_0(%arg0: i32) -> (i32, i32) {
    %c0_i32 = arith.constant 0 : i32
    %c0_i32_0 = arith.constant 0 : i32
    return %c0_i32, %arg0 : i32, i32
  }
  func.func @transform_1(%arg0: i32) -> (i32, i32) {
    %c0_i32 = arith.constant 0 : i32
    %c0_i32_0 = arith.constant 0 : i32
    return %c0_i32, %arg0 : i32, i32
  }
}

</mosaic_0001>

<llo_original>
// kernel: tpu_custom_call.1
$region0: #{tpu_custom_call.1}
  #allocation0 [shape = 'u32[]', space=smem, size = 0x4, offset = 0x4, fixed_abs, tag = 'smem constant byte address 0x4 - core index']
  #allocation1 [shape = 'u32[144,128]{1,0:T(1,128)}', space=vmem, size = 0x12000, scoped, tag = 'internal scratch']
  %s0 = inlined_call_operand.vmem [shape: f32[16,8], index: 0, kind: input, shape index: {}]
  %s1 = inlined_call_operand.hbm [shape: f32[1,8], index: 1, kind: output, shape index: {}]
  %s2 = sld [smem:[#allocation0]]
  $region14: #{tpu_custom_call.1} parent=0
    _
  %s4 = ssub.s32 1, %s2
  %s5 = scalar_select 0, %s4, %s2
  $region1: #{tpu_custom_call.1} parent=0
    #allocation2 [shape = 'u8[512]{0}', space=vmem, size = 0x400, scoped, tag = 'output window, operand 0, single buffered']
    #allocation3 [shape = 's32[1]{0}', space=sflag, size = 0x4, scoped, tag = 'scoped memory for tpu_custom_call.1']
    %6 = vsyncpa [#allocation3], 0
    // Predicated region
    $region2: #{tpu_custom_call.1} parent=1 // pred_check
      _
    $region3: #{tpu_custom_call.1} parent=1 // pred_check_branch
      %8 = sbr.rel (0) target = $region5
    $region4: #{tpu_custom_call.1} parent=1 // pred_region
      _
    $region5: #{tpu_custom_call.1} parent=1 // pred_fallthru
      _
    %v9 = vld [vmem:[%s0] sm:$0xff]
    %v10 = vld [vmem:[%s0 + $0x8] sm:$0xff]
    %v11 = vlaneseq
    %v12 = vshrl.u32 %v11, 7
    %v13 = vadd.s32 %v12, 8
    %vm14 = vcmp.ge.s32.totalorder %v12, 8
    %vm15 = vcmp.ge.s32.totalorder %v13, 8
    %v16 = vsel %vm14, 1.0, -1.0
    %v17 = vsel %vm15, 1.0, -1.0
    %v18 = vmul.f32 %v9, %v16
    %v19 = vmul.f32 %v10, %v17
    %vm20 = vcmask 64512
    %v21 = vsel %vm20, %v18, 0.0
    %v22 = vsel %vm20, %v19, 0.0
    %v23 = vadd.f32 %v21, %v22
    %v24 = vrot.slane %v23, 4
    %v25 = vadd.f32 %v23, %v24
    %v26 = vrot.slane %v25, 2
    %v27 = vadd.f32 %v25, %v26
    %v28 = vrot.slane %v27, 1
    %v29 = vadd.f32 %v27, %v28
    %v30 = vsel %vm20, %v9, -inf
    %v31 = vsel %vm20, %v10, -inf
    %v32 = vmax.f32 %v30, %v31
    %v33 = vrot.slane %v32, 4
    %v34 = vmax.f32 %v32, %v33
    %v35 = vrot.slane %v34, 2
    %v36 = vmax.f32 %v34, %v35
    %v37 = vrot.slane %v36, 1
    %v38 = vmax.f32 %v36, %v37
    %v39 = vsel %vm20, %v9, inf
    %v40 = vsel %vm20, %v10, inf
    %v41 = vmin.f32 %v39, %v40
    %v42 = vrot.slane %v41, 4
    %v43 = vmin.f32 %v41, %v42
    %v44 = vrot.slane %v43, 2
    %v45 = vmin.f32 %v43, %v44
    %v46 = vrot.slane %v45, 1
    %v47 = vmin.f32 %v45, %v46
    %v48 = vadd.f32 %v38, %v47
    %v49 = vmul.f32 %v48, 0.5
    %v50 = vsub.f32 %v9, %v49
    %v51 = vsub.f32 %v10, %v49
    %v52 = vmul.f32 %v50, 1.442695
    %v53 = vpow.pop %v52
    %v54 = vmul.f32 %v51, 1.442695
    %v55 = vpow.pop %v54
    %v56 = vrcp.pop %v53
    %v57 = vrcp.pop %v55
    %v58 = vmul.f32 %v53, %v56
    %v59 = vmul.f32 %v55, %v57
    %v60 = vsub.f32 2.0, %v58
    %v61 = vsub.f32 2.0, %v59
    %v62 = vmul.f32 %v56, %v60
    %v63 = vmul.f32 %v57, %v61
    %v64 = vlaneseq
    %v65 = vand.u32 %v64, 127
    %vm66 = vcmp.ge.s32.totalorder %v65, %v12
    %v67 = vsub.s32 16, %v12
    %vm68 = vcmp.lt.s32.totalorder %v65, %v67
    %vm69 = vmand %vm66, %vm68
    %v70 = vsel %vm69, 1, 0
    %v71 = vcvt.s32.f32 %v70
    %vm72 = vcmask 130048
    %v74 = vsel %vm72, %v71, 0
    %76 = vmatprep.subr.mxu0 0.0
    %77 = vmatpush1.msra.mxu0 %v53
    %78 = vmatprep.subr.mxu0 0.0
    %79 = vmatpush1.msra.mxu0 %v55
    %80 = vmatprep.subr.mxu0 0.0
    %81 = vmatpush1.msra.mxu0 0.0
    %82 = vmatprep.subr.mxu0 0.0
    %83 = vmatpush1.msra.mxu0 0.0
    %84 = vmatprep.subr.mxu0 0.0
    %85 = vmatpush1.msra.mxu0 0.0
    %86 = vmatprep.subr.mxu0 0.0
    %87 = vmatpush1.msra.mxu0 0.0
    %88 = vmatprep.subr.mxu0 0.0
    %89 = vmatpush1.msra.mxu0 0.0
    %90 = vmatprep.subr.mxu0 0.0
    %91 = vmatpush1.msra.mxu0 0.0
    %92 = vmatprep.subr.mxu0 0.0
    %93 = vmatpush1.msra.mxu0 0.0
    %94 = vmatprep.subr.mxu0 0.0
    %95 = vmatpush1.msra.mxu0 0.0
    %96 = vmatprep.subr.mxu0 0.0
    %97 = vmatpush1.msra.mxu0 0.0
    %98 = vmatprep.subr.mxu0 0.0
    %99 = vmatpush1.msra.mxu0 0.0
    %100 = vmatprep.subr.mxu0 0.0
    %101 = vmatpush1.msra.mxu0 0.0
    %102 = vmatprep.subr.mxu0 0.0
    %103 = vmatpush1.msra.mxu0 0.0
    %104 = vmatprep.subr.mxu0 0.0
    %105 = vmatpush1.msra.mxu0 0.0
    %106 = vmatprep.subr.mxu0 0.0
    %107 = vmatpush1.msra.mxu0 0.0
    %108 = vmatprep.subr.mxu0 0.0
    %109 = vmatpush1.msra.mxu0 0.0
    %110 = vmatprep.subr.mxu0 0.0
    %111 = vmatpush1.msra.mxu0 0.0
    %112 = vmatprep.subr.mxu0 0.0
    %113 = vmatpush1.msra.mxu0 0.0
    %114 = vmatprep.subr.mxu0 0.0
    %115 = vmatpush1.msra.mxu0 0.0
    %116 = vmatprep.subr.mxu0 0.0
    %117 = vmatpush1.msra.mxu0 0.0
    %118 = vmatprep.subr.mxu0 0.0
    %119 = vmatpush1.msra.mxu0 0.0
    %120 = vmatprep.subr.mxu0 0.0
    %121 = vmatpush1.msra.mxu0 0.0
    %122 = vmatprep.subr.mxu0 0.0
    %123 = vmatpush1.msra.mxu0 0.0
    %124 = vmatprep.subr.mxu0 0.0
    %125 = vmatpush1.msra.mxu0 0.0
    %126 = vmatprep.subr.mxu0 0.0
    %127 = vmatpush1.msra.mxu0 0.0
    %128 = vmatprep.subr.mxu0 0.0
    %129 = vmatpush1.msra.mxu0 0.0
    %130 = vmatprep.subr.mxu0 0.0
    %131 = vmatpush1.msra.mxu0 0.0
    %132 = vmatprep.subr.mxu0 0.0
    %133 = vmatpush1.msra.mxu0 0.0
    %134 = vmatprep.subr.mxu0 0.0
    %135 = vmatpush1.msra.mxu0 0.0
    %136 = vmatprep.subr.mxu0 0.0
    %137 = vmatpush1.msra.mxu0 0.0
    %138 = vmatprep.subr.mxu0 0.0
    %139 = vmatpush1.msra.mxu0 0.0
    %140 = vmatprep.mubr.f32.mxu0 0.0
    %141 = vmatmul.mubr.f32.gmra.mrb[0].mxu0 %v74
    %v142 = vpop.f32.mrb[0].mxu0
    %v143 = vadd.f32 0.0, %v142
    %v144 = vpop.f32.mrb[0].mxu0
    %145 = vdwg.mxu0
    %146 = vmatprep.subr.mxu0 0.0
    %147 = vmatpush1.msra.mxu0 %v62
    %148 = vmatprep.subr.mxu0 0.0
    %149 = vmatpush1.msra.mxu0 %v63
    %150 = vmatprep.subr.mxu0 0.0
    %151 = vmatpush1.msra.mxu0 0.0
    %152 = vmatprep.subr.mxu0 0.0
    %153 = vmatpush1.msra.mxu0 0.0
    %154 = vmatprep.subr.mxu0 0.0
    %155 = vmatpush1.msra.mxu0 0.0
    %156 = vmatprep.subr.mxu0 0.0
    %157 = vmatpush1.msra.mxu0 0.0
    %158 = vmatprep.subr.mxu0 0.0
    %159 = vmatpush1.msra.mxu0 0.0
    %160 = vmatprep.subr.mxu0 0.0
    %161 = vmatpush1.msra.mxu0 0.0
    %162 = vmatprep.subr.mxu0 0.0
    %163 = vmatpush1.msra.mxu0 0.0
    %164 = vmatprep.subr.mxu0 0.0
    %165 = vmatpush1.msra.mxu0 0.0
    %166 = vmatprep.subr.mxu0 0.0
    %167 = vmatpush1.msra.mxu0 0.0
    %168 = vmatprep.subr.mxu0 0.0
    %169 = vmatpush1.msra.mxu0 0.0
    %170 = vmatprep.subr.mxu0 0.0
    %171 = vmatpush1.msra.mxu0 0.0
    %172 = vmatprep.subr.mxu0 0.0
    %173 = vmatpush1.msra.mxu0 0.0
    %174 = vmatprep.subr.mxu0 0.0
    %175 = vmatpush1.msra.mxu0 0.0
    %176 = vmatprep.subr.mxu0 0.0
    %177 = vmatpush1.msra.mxu0 0.0
    %178 = vmatprep.subr.mxu0 0.0
    %179 = vmatpush1.msra.mxu0 0.0
    %180 = vmatprep.subr.mxu0 0.0
    %181 = vmatpush1.msra.mxu0 0.0
    %182 = vmatprep.subr.mxu0 0.0
    %183 = vmatpush1.msra.mxu0 0.0
    %184 = vmatprep.subr.mxu0 0.0
    %185 = vmatpush1.msra.mxu0 0.0
    %186 = vmatprep.subr.mxu0 0.0
    %187 = vmatpush1.msra.mxu0 0.0
    %188 = vmatprep.subr.mxu0 0.0
    %189 = vmatpush1.msra.mxu0 0.0
    %190 = vmatprep.subr.mxu0 0.0
    %191 = vmatpush1.msra.mxu0 0.0
    %192 = vmatprep.subr.mxu0 0.0
    %193 = vmatpush1.msra.mxu0 0.0
    %194 = vmatprep.subr.mxu0 0.0
    %195 = vmatpush1.msra.mxu0 0.0
    %196 = vmatprep.subr.mxu0 0.0
    %197 = vmatpush1.msra.mxu0 0.0
    %198 = vmatprep.subr.mxu0 0.0
    %199 = vmatpush1.msra.mxu0 0.0
    %200 = vmatprep.subr.mxu0 0.0
    %201 = vmatpush1.msra.mxu0 0.0
    %202 = vmatprep.subr.mxu0 0.0
    %203 = vmatpush1.msra.mxu0 0.0
    %204 = vmatprep.subr.mxu0 0.0
    %205 = vmatpush1.msra.mxu0 0.0
    %206 = vmatprep.subr.mxu0 0.0
    %207 = vmatpush1.msra.mxu0 0.0
    %208 = vmatprep.subr.mxu0 0.0
    %209 = vmatpush1.msra.mxu0 0.0
    %210 = vmatprep.mubr.f32.mxu0 0.0
    %211 = vmatmul.mubr.f32.gmra.mrb[0].mxu0 %v74
    %v212 = vpop.f32.mrb[0].mxu0
    %v213 = vadd.f32 0.0, %v212
    %v214 = vpop.f32.mrb[0].mxu0
    %215 = vdwg.mxu0
    %v216 = vlog2.pop %v143
    %v217 = vmul.f32 %v216, 0.6931472
    %v218 = vsel %vm20, %v217, 0.0
    %v219 = vrot.slane %v218, 4
    %v220 = vadd.f32 %v218, %v219
    %v221 = vrot.slane %v220, 2
    %v222 = vadd.f32 %v220, %v221
    %v223 = vrot.slane %v222, 1
    %v224 = vadd.f32 %v222, %v223
    %v225 = vlog2.pop %v213
    %v226 = vmul.f32 %v225, 0.6931472
    %v227 = vsel %vm20, %v226, 0.0
    %v228 = vrot.slane %v227, 4
    %v229 = vadd.f32 %v227, %v228
    %v230 = vrot.slane %v229, 2
    %v231 = vadd.f32 %v229, %v230
    %v232 = vrot.slane %v231, 1
    %v233 = vadd.f32 %v231, %v232
    %v234 = vadd.f32 %v224, %v233
    %v235 = vadd.f32 %v29, %v234
    %vm236 = vcmask 57344
    %237 = vst.msk [vmem:[#allocation2] sm:$0x1] %vm236, %v235
    // Predicated region
    $region6: #{tpu_custom_call.1} parent=1 // pred_check
      _
    $region7: #{tpu_custom_call.1} parent=1 // pred_check_branch
      %239 = sbr.rel (0) target = $region9
    $region8: #{tpu_custom_call.1} parent=1 // pred_region
      %s241 = ssub.s32 16, 16
      %242 = vsyncadd [#allocation3], %s241
      %s244 = sshll.u32 [#allocation2], 4
      %s245 = int_to_ptr.vmem [resolvable:$true] %s244
      %247 = dma.vmem_to_hbm [thread:$0]  %s245, 16, %s1, [#allocation3]
    $region9: #{tpu_custom_call.1} parent=1 // pred_fallthru
      _
    // Predicated region
    $region10: #{tpu_custom_call.1} parent=1 // pred_check
      _
    $region11: #{tpu_custom_call.1} parent=1 // pred_check_branch
      %249 = sbr.rel (0) target = $region13
    $region12: #{tpu_custom_call.1} parent=1 // pred_region
      %250 = dma.done [#allocation3], 16
    $region13: #{tpu_custom_call.1} parent=1 // pred_fallthru
      _
    %251 = vsyncpa [#allocation3], 1

</llo_original>
